<compile_context>
chip_gen: v6e
topology: v6e:2x2x1
jax: 0.10.0
libtpu: 0.0.40
codegen_flags: <defaults>
</compile_context>

<pallas_src>
import functools

import jax
import jax.numpy as jnp
from jax.experimental import pallas as pl
from jax.experimental.pallas import tpu as pltpu


def _gnmax_kernel(x_ref, w_ref, o_ref, acc_ref, *, n_valid, tile_n):
    """One (batch-tile b, node-tile n) grid step.

    x_ref  : (tile_b, tile_n, F) VMEM node-feature tile
    w_ref  : (1, F)              VMEM Linear(64, 1) weight row (resident)
    o_ref  : (tile_b, 1, 1)      VMEM output block
    acc_ref: (tile_b, 1)         VMEM running-max scratch (persists across node tiles)
    """
    n = pl.program_id(1)
    last_n = pl.num_programs(1) - 1

    # Initialize the running max on the first node tile of each batch tile.
    @pl.when(n == 0)
    def _():
        acc_ref[...] = jnp.full(acc_ref.shape, -jnp.inf, acc_ref.dtype)

    # phi_v: per-node Linear(F -> 1) as VPU multiply + lane reduce (exact f32).
    x = x_ref[...].astype(jnp.float32)                       # (tile_b, tile_n, F)
    w = w_ref[...].astype(jnp.float32).reshape(1, 1, -1)     # (1, 1, F)
    scores = jnp.sum(x * w, axis=-1)                         # (tile_b, tile_n)

    ragged = (n_valid % tile_n) != 0
    if ragged:
        # Only the final node tile can contain out-of-bounds (garbage) rows;
        # gate the iota + where mask to that single tile.
        @pl.when(n != last_n)
        def _():
            acc_ref[...] = jnp.maximum(
                acc_ref[...], jnp.max(scores, axis=1, keepdims=True))

        @pl.when(n == last_n)
        def _():
            node = jax.lax.broadcasted_iota(jnp.int32, scores.shape, 1) + n * tile_n
            masked = jnp.where(node < n_valid, scores, -jnp.inf)
            acc_ref[...] = jnp.maximum(
                acc_ref[...], jnp.max(masked, axis=1, keepdims=True))
    else:
        # rho_vu: online max over node tiles (no OOB rows possible).
        acc_ref[...] = jnp.maximum(
            acc_ref[...], jnp.max(scores, axis=1, keepdims=True))

    # Write each per-graph result exactly once (epilogue on the last node tile).
    @pl.when(n == last_n)
    def _():
        o_ref[...] = acc_ref[...].reshape(o_ref.shape)


def _choose_tiles(B, N, F, itemsize, byte_budget):
    """Pick (tile_b, tile_n) so one x block is ~byte_budget bytes."""
    graph_bytes = N * F * itemsize
    if B * graph_bytes <= byte_budget:
        return B, N                                   # whole problem in one block
    if graph_bytes <= byte_budget:
        tile_b = int(min(B, max(1, byte_budget // graph_bytes)))
        return tile_b, N                              # pack several graphs per block
    # Single graph exceeds the budget: tile the node axis (multiple of 8 sublanes).
    row_bytes = F * itemsize
    tile_n = int(max(8, (byte_budget // row_bytes) // 8 * 8))
    return 1, tile_n


def gnmax_forward(x, w, bias, *, byte_budget=4 * 1024 * 1024):
    """x: [B, N, F], w: [1, F], bias: [1]  ->  [B, 1] f32 (= dec(core(g)).attr.val)."""
    B, N, F = x.shape
    assert w.shape == (1, F) and bias.shape == (1,)

    itemsize = jnp.dtype(x.dtype).itemsize
    tile_b, tile_n = _choose_tiles(B, N, F, itemsize, byte_budget)
    grid_b = pl.cdiv(B, tile_b)
    grid_n = pl.cdiv(N, tile_n)

    w_row = w.astype(jnp.float32)                     # (1, F), tiny, stays resident

    kernel = functools.partial(_gnmax_kernel, n_valid=N, tile_n=tile_n)

    cost = pl.CostEstimate(
        flops=2 * B * N * F,
        transcendentals=0,
        bytes_accessed=B * N * F * itemsize + F * 4 + B * 4,
    )

    out = pl.pallas_call(
        kernel,
        out_shape=jax.ShapeDtypeStruct((B, 1, 1), jnp.float32),
        grid_spec=pltpu.PrefetchScalarGridSpec(
            num_scalar_prefetch=0,
            grid=(grid_b, grid_n),
            in_specs=[
                # node-feature tile: streams in its native dtype, no wrapper-side pad/cast
                pl.BlockSpec((tile_b, tile_n, F), lambda b, n: (b, n, 0)),
                # weight row, identical every step -> resident in VMEM
                pl.BlockSpec((1, F), lambda b, n: (0, 0)),
            ],
            out_specs=pl.BlockSpec((tile_b, 1, 1), lambda b, n: (b, 0, 0)),
            scratch_shapes=[pltpu.VMEM((tile_b, 1), jnp.float32)],
        ),
        compiler_params=pltpu.CompilerParams(
            # graphs are independent -> megacore-parallel on v7x; node tiles are the reduction.
            dimension_semantics=("parallel", "arbitrary"),
        ),
        cost_estimate=cost,
    )(x, w_row)

    # Bias commutes with max: max_i(s_i + b) == max_i(s_i) + b.
    return out.reshape(B, 1) + bias


if __name__ == "__main__":
    key = jax.random.PRNGKey(0)
    kx, kw, kb, kx2 = jax.random.split(key, 4)

    B, N, F = 2, 16, 64  # 2 graphs, 16 nodes each, 64 node features (nn.Linear(64, 1))

    x = jax.random.normal(kx, (B, N, F), dtype=jnp.float32)
    w = jax.random.normal(kw, (1, F), dtype=jnp.float32) * 0.1
    bias = jax.random.normal(kb, (1,), dtype=jnp.float32) * 0.1

    def ref_fn(xa):
        return jnp.max(
            jnp.einsum("bnf,of->bno", xa, w, precision=jax.lax.Precision.HIGHEST)
            + bias[None, None, :],
            axis=1,
        )

    # Small-graph path: whole batch in one block (grid = (1, 1)).
    out = jax.block_until_ready(gnmax_forward(x, w, bias))
    ref = ref_fn(x)
    assert out.shape == (B, 1), out.shape
    assert jnp.allclose(out, ref, atol=1e-4, rtol=1e-4), (out, ref)

    # Node-tiled path with a ragged last tile (forced tiny byte budget -> tile_n=8, grid_n=3),
    # exercising the in-kernel -inf mask that replaces the old wrapper-side jnp.pad.
    x2 = jax.random.normal(kx2, (1, 20, F), dtype=jnp.float32)
    out2 = jax.block_until_ready(gnmax_forward(x2, w, bias, byte_budget=2048))
    ref2 = ref_fn(x2)
    assert out2.shape == (1, 1), out2.shape
    assert jnp.allclose(out2, ref2, atol=1e-4, rtol=1e-4), (out2, ref2)

    print("KERNEL_OK")
</pallas_src>

<mosaic_0001>
module attributes {stable_mosaic.version = 11 : i64} {
  func.func @_gnmax_kernel(%arg0: i32, %arg1: i32, %arg2: memref<2x16x64xf32, #tpu.memory_space<vmem>>, %arg3: memref<1x64xf32, #tpu.memory_space<vmem>>, %arg4: memref<2x1x1xf32, #tpu.memory_space<vmem>>, %arg5: memref<2x1xf32, #tpu.memory_space<vmem>>) attributes {dimension_semantics = [#tpu.dimension_semantics<parallel>, #tpu.dimension_semantics<arbitrary>], iteration_bounds = array<i64: 1, 1>, scalar_prefetch = 0 : i64, scratch_operands = 1 : i64, tpu.core_type = #tpu.core_type<tc>, window_params = [{transform_indices = @transform_0, window_bounds = array<i64: 2, 16, 64>}, {pipeline_mode = #tpu.pipeline_mode<synchronous>, transform_indices = @transform_1, window_bounds = array<i64: 1, 64>}, {transform_indices = @transform_2, window_bounds = array<i64: 2, 1, 1>}]} {
    %c0_i32 = arith.constant 0 : i32
    %0 = arith.cmpi eq, %arg1, %c0_i32 : i32
    %1 = arith.extui %0 : i1 to i32
    %c0_i32_0 = arith.constant 0 : i32
    %2 = arith.cmpi ne, %1, %c0_i32_0 : i32
    scf.if %2 {
      %cst_12 = arith.constant 0xFF800000 : f32
      %17 = vector.broadcast %cst_12 : f32 to vector<2x1xf32>
      %c0_13 = arith.constant 0 : index
      %c0_14 = arith.constant 0 : index
      %18 = vector.load %arg5[%c0_13, %c0_14] : memref<2x1xf32, #tpu.memory_space<vmem>>, vector<2x1xf32>
      tpu.vector_store %arg5[%c0_13, %c0_14], %17 {strides = array<i32>} : memref<2x1xf32, #tpu.memory_space<vmem>>, vector<2x1xf32>,
    } else {
    }
    %c0 = arith.constant 0 : index
    %c0_1 = arith.constant 0 : index
    %c0_2 = arith.constant 0 : index
    %3 = vector.load %arg2[%c0, %c0_1, %c0_2] : memref<2x16x64xf32, #tpu.memory_space<vmem>>, vector<2x16x64xf32>
    %c0_3 = arith.constant 0 : index
    %c0_4 = arith.constant 0 : index
    %4 = vector.load %arg3[%c0_3, %c0_4] : memref<1x64xf32, #tpu.memory_space<vmem>>, vector<1x64xf32>
    %5 = vector.shape_cast %4 : vector<1x64xf32> to vector<1x1x64xf32>
    %6 = vector.broadcast %5 : vector<1x1x64xf32> to vector<2x16x64xf32>
    %7 = arith.mulf %3, %6 : vector<2x16x64xf32>
    %cst = arith.constant dense<0.000000e+00> : vector<2x16xf32>
    %8 = vector.multi_reduction <add>, %7, %cst [2] : vector<2x16x64xf32> to vector<2x16xf32>
    %c0_5 = arith.constant 0 : index
    %c0_6 = arith.constant 0 : index
    %9 = vector.load %arg5[%c0_5, %c0_6] : memref<2x1xf32, #tpu.memory_space<vmem>>, vector<2x1xf32>
    %cst_7 = arith.constant dense<0xFF800000> : vector<2xf32>
    %10 = vector.multi_reduction <maximumf>, %8, %cst_7 [1] : vector<2x16xf32> to vector<2xf32>
    %11 = vector.shape_cast %10 : vector<2xf32> to vector<2x1xf32>
    %12 = arith.maximumf %9, %11 : vector<2x1xf32>
    %c0_8 = arith.constant 0 : index
    %c0_9 = arith.constant 0 : index
    %13 = vector.load %arg5[%c0_8, %c0_9] : memref<2x1xf32, #tpu.memory_space<vmem>>, vector<2x1xf32>
    tpu.vector_store %arg5[%c0_8, %c0_9], %12 {strides = array<i32>} : memref<2x1xf32, #tpu.memory_space<vmem>>, vector<2x1xf32>,
    %c0_i32_10 = arith.constant 0 : i32
    %14 = arith.cmpi eq, %arg1, %c0_i32_10 : i32
    %15 = arith.extui %14 : i1 to i32
    %c0_i32_11 = arith.constant 0 : i32
    %16 = arith.cmpi ne, %15, %c0_i32_11 : i32
    scf.if %16 {
      %c0_12 = arith.constant 0 : index
      %c0_13 = arith.constant 0 : index
      %17 = vector.load %arg5[%c0_12, %c0_13] : memref<2x1xf32, #tpu.memory_space<vmem>>, vector<2x1xf32>
      %18 = vector.shape_cast %17 : vector<2x1xf32> to vector<2x1x1xf32>
      %c0_14 = arith.constant 0 : index
      %c0_15 = arith.constant 0 : index
      %c0_16 = arith.constant 0 : index
      %19 = vector.load %arg4[%c0_14, %c0_15, %c0_16] : memref<2x1x1xf32, #tpu.memory_space<vmem>>, vector<2x1x1xf32>
      tpu.vector_store %arg4[%c0_14, %c0_15, %c0_16], %18 {strides = array<i32>} : memref<2x1x1xf32, #tpu.memory_space<vmem>>, vector<2x1x1xf32>,
    } else {
    }
    return
  }
  func.func @transform_0(%arg0: i32, %arg1: i32) -> (i32, i32, i32) {
    %c0_i32 = arith.constant 0 : i32
    %c0_i32_0 = arith.constant 0 : i32
    return %arg0, %arg1, %c0_i32 : i32, i32, i32
  }
  func.func @transform_1(%arg0: i32, %arg1: i32) -> (i32, i32) {
    %c0_i32 = arith.constant 0 : i32
    %c0_i32_0 = arith.constant 0 : i32
    %c0_i32_1 = arith.constant 0 : i32
    return %c0_i32, %c0_i32_0 : i32, i32
  }
  func.func @transform_2(%arg0: i32, %arg1: i32) -> (i32, i32, i32) {
    %c0_i32 = arith.constant 0 : i32
    %c0_i32_0 = arith.constant 0 : i32
    %c0_i32_1 = arith.constant 0 : i32
    return %arg0, %c0_i32, %c0_i32_0 : i32, i32, i32
  }
}

</mosaic_0001>

<llo_original>
// kernel: tpu_custom_call.1
$region0: #{tpu_custom_call.1}
  #allocation0 [shape = 'u32[]', space=smem, size = 0x4, offset = 0x4, fixed_abs, tag = 'smem constant byte address 0x4 - core index']
  #allocation1 [shape = 'u32[144,128]{1,0:T(1,128)}', space=vmem, size = 0x12000, scoped, tag = 'internal scratch']
  #allocation2 [shape = 'f32[2,1]{1,0:T(2,128)}', space=vmem, size = 0x400, scoped, tag = 'scratch operand']
  %s0 = inlined_call_operand.hbm [shape: f32[2,16,64], index: 0, kind: input, shape index: {}]
  %s1 = inlined_call_operand.vmem [shape: f32[1,64], index: 1, kind: input, shape index: {}]
  %s2 = inlined_call_operand.vmem [shape: f32[2,1,1], index: 2, kind: output, shape index: {}]
  %s3 = sld [smem:[#allocation0]]
  $region30: #{tpu_custom_call.1} parent=0
    _
  %s5 = ssub.s32 1, %s3
  %s6 = scalar_select 0, %s5, %s3
  $region1: #{tpu_custom_call.1} parent=0
    #allocation3 [shape = 'u8[16384]{0}', space=vmem, size = 0x4000, scoped, tag = 'input window, operand 0, single buffered']
    #allocation4 [shape = 's32[1]{0}', space=sflag, size = 0x4, scoped, tag = 'scoped memory for tpu_custom_call.1']
    %7 = vsyncpa [#allocation4], 0
    // Predicated region
    $region2: #{tpu_custom_call.1} parent=1 // pred_check
      _
    $region3: #{tpu_custom_call.1} parent=1 // pred_check_branch
      %9 = sbr.rel (0) target = $region5
    $region4: #{tpu_custom_call.1} parent=1 // pred_region
      %s11 = ssub.s32 512, 512
      %12 = vsyncadd [#allocation4], %s11
      %s13 = sshll.u32 [#allocation3], 4
      %s14 = int_to_ptr.vmem [resolvable:$true] %s13
      %19 = dma.hbm_to_vmem [thread:$0]  %s0, 512, %s14, [#allocation4], 128, 128, 8
    $region5: #{tpu_custom_call.1} parent=1 // pred_fallthru
      _
    // Predicated region
    $region6: #{tpu_custom_call.1} parent=1 // pred_check
      _
    $region7: #{tpu_custom_call.1} parent=1 // pred_check_branch
      %21 = sbr.rel (0) target = $region9
    $region8: #{tpu_custom_call.1} parent=1 // pred_region
      _
    $region9: #{tpu_custom_call.1} parent=1 // pred_fallthru
      _
    // Predicated region
    $region10: #{tpu_custom_call.1} parent=1 // pred_check
      _
    $region11: #{tpu_custom_call.1} parent=1 // pred_check_branch
      %23 = sbr.rel (0) target = $region13
    $region12: #{tpu_custom_call.1} parent=1 // pred_region
      %24 = dma.done [#allocation4], 512
    $region13: #{tpu_custom_call.1} parent=1 // pred_fallthru
      _
    %p25 = scmp.eq.s32.totalorder 0, 0
    // Predicated region
    $region14: #{tpu_custom_call.1} parent=1 // pred_check
      %p26 = pneg %p25
    $region15: #{tpu_custom_call.1} parent=1 // pred_check_branch
      %28 = sbr.rel (%p26) target = $region17
    $region16: #{tpu_custom_call.1} parent=1 // pred_region
      %vm29 = vcmask 1024
      %30 = vst.msk [vmem:[#allocation2] sm:$0x3] %vm29, -inf
    $region17: #{tpu_custom_call.1} parent=1 // pred_fallthru
      _
    %v31 = vld [vmem:[#allocation3] sm:$0xff]
    %v32 = vld [vmem:[#allocation3 + $0x8] sm:$0xff]
    %v33 = vld [vmem:[#allocation3 + $0x10] sm:$0xff]
    %v34 = vld [vmem:[#allocation3 + $0x18] sm:$0xff]
    %v35 = vld [vmem:[%s1] sm:$0x1]
    %v37 = vlaneseq
    %v38 = vshrl.u32 %v37, 7
    %v39 = vsub.s32 0, %v38
    %v40 = vrot.slane %v35, %v39
    %v42 = vmul.f32 %v31, %v40
    %v43 = vmul.f32 %v32, %v40
    %v44 = vmul.f32 %v33, %v40
    %v45 = vmul.f32 %v34, %v40
    %vm46 = vcmask 523264
    %v47 = vsel %vm46, %v42, 0.0
    %48 = vadd.xlane.f32.xlu0 %v47
    %v49 = vpop.xlane.xlu0 %48
    %v50 = vsel %vm46, %v43, 0.0
    %51 = vadd.xlane.f32.xlu0 %v50
    %v52 = vpop.xlane.xlu0 %51
    %v53 = vsel %vm46, %v44, 0.0
    %54 = vadd.xlane.f32.xlu0 %v53
    %v55 = vpop.xlane.xlu0 %54
    %v56 = vsel %vm46, %v45, 0.0
    %57 = vadd.xlane.f32.xlu0 %v56
    %v58 = vpop.xlane.xlu0 %57
    %v59 = vld [vmem:[#allocation2] sm:$0x3]
    %v64 = vlaneseq
    %v65 = vand.u32 %v64, 127
    %v66 = vlaneseq
    %v67 = vshrl.u32 %v66, 7
    %v68 = vsub.s32 %v65, %v67
    %v69 = vrot.slane %v49, %v68
    %v70 = vadd.s32 %v65, 4294967288
    %v71 = vlaneseq
    %v72 = vshrl.u32 %v71, 7
    %v73 = vsub.s32 %v70, %v72
    %v74 = vrot.slane %v52, %v73
    %vm75 = vcmask 130112
    %v76 = vsel %vm75, %v74, %v69
    %v77 = vlaneseq
    %v78 = vshrl.u32 %v77, 7
    %v79 = vsub.s32 %v65, %v78
    %v80 = vrot.slane %v55, %v79
    %v81 = vlaneseq
    %v82 = vshrl.u32 %v81, 7
    %v83 = vsub.s32 %v70, %v82
    %v84 = vrot.slane %v58, %v83
    %v85 = vsel %vm75, %v84, %v80
    %vm86 = vcmask 1041409
    %v87 = vsel %vm86, %v85, %v76
    %vm89 = vcmask 123904
    %v90 = vsel %vm89, %v87, -inf
    %91 = vmax.xlane.f32.xlu0 %v90
    %v92 = vpop.xlane.xlu0 %91
    %v93 = vmax.f32 %v59, %v92
    %vm94 = vcmask 1024
    %95 = vst.msk [vmem:[#allocation2] sm:$0x3] %vm94, %v93
    // Predicated region
    $region18: #{tpu_custom_call.1} parent=1 // pred_check
      %p96 = pneg %p25
    $region19: #{tpu_custom_call.1} parent=1 // pred_check_branch
      %98 = sbr.rel (%p96) target = $region21
    $region20: #{tpu_custom_call.1} parent=1 // pred_region
      %v99 = vld [vmem:[#allocation2] sm:$0x3]
      %v102 = vunpack.c.l.s4 1966171168
      %v103 = vunpack.c.0.s8 %v102
      %v104 = vlaneseq
      %v105 = vshrl.u32 %v104, 7
      %v106 = vsub.s32 %v103, %v105
      %v107 = vrot.slane %v99, %v106
      %v108 = vcombine.high %v107, %v107
      %v110 = vunpack.c.l.s4 1966171168
      %v111 = vunpack.c.0.s8 %v110
      %v112 = vlaneseq
      %v113 = vshrl.u32 %v112, 7
      %v114 = vsub.s32 %v111, %v113
      %v115 = vrot.slane %v107, %v114
      %v117 = vunpack.c.l.s4 1966171168
      %v118 = vunpack.c.0.s8 %v117
      %v119 = vlaneseq
      %v120 = vshrl.u32 %v119, 7
      %v121 = vsub.s32 %v118, %v120
      %v122 = vrot.slane %v108, %v121
      %vm125 = vcmask 0
      %126 = vst.msk [vmem:[%s2] sm:$0x1] %vm125, %v115
      %127 = vst.msk [vmem:[%s2 + $0x1] sm:$0x1] %vm125, %v122
    $region21: #{tpu_custom_call.1} parent=1 // pred_fallthru
      _
    // Predicated region
    $region22: #{tpu_custom_call.1} parent=1 // pred_check
      _
    $region23: #{tpu_custom_call.1} parent=1 // pred_check_branch
      %129 = sbr.rel (0) target = $region25
    $region24: #{tpu_custom_call.1} parent=1 // pred_region
      _
    $region25: #{tpu_custom_call.1} parent=1 // pred_fallthru
      _
    // Predicated region
    $region26: #{tpu_custom_call.1} parent=1 // pred_check
      _
    $region27: #{tpu_custom_call.1} parent=1 // pred_check_branch
      %131 = sbr.rel (0) target = $region29
    $region28: #{tpu_custom_call.1} parent=1 // pred_region
      _
    $region29: #{tpu_custom_call.1} parent=1 // pred_fallthru
      _
    %132 = vsyncpa [#allocation4], 1

</llo_original>
